<compile_context>
chip_gen: v5e
topology: v5e:2x2
jax: 0.10.0
libtpu: 0.0.40
codegen_flags: <defaults>
</compile_context>

<pallas_src>
import numpy as np
import jax
import jax.numpy as jnp
from jax import lax
from jax.experimental import pallas as pl
from jax.experimental.pallas import tpu as pltpu

LOG_ADJUST = float(np.log(np.float32(1e-6)))   # matches torch.log(tensor(1e-6))
LANES = 128                                    # TPU vreg lane width
DEFAULT_TILE_ROWS = 1024                       # 1024*128 px/block (see VMEM note)


def _build_stain_matrices():
    """Deterministic parameter setup matching ColourAugment.__init__."""
    H_vec = np.array([0.65, 0.70, 0.29], dtype=np.float64)
    E_vec = np.array([0.07, 0.99, 0.11], dtype=np.float64)
    residual = np.cross(H_vec, E_vec)
    rgb_from_hed = np.stack([H_vec, E_vec, residual]).astype(np.float32)
    hed_from_rgb = np.linalg.inv(rgb_from_hed.astype(np.float64)).astype(np.float32)
    return jnp.asarray(rgb_from_hed), jnp.asarray(hed_from_rgb)


def colour_augment_kernel(mf_ref, mb2_ref, bias_ref, img_ref, out_ref):
    # img_ref / out_ref: (3, R, L) VMEM blocks.
    #   packed path: R = TM (multiple of 8), L = 128 (lane-dense).
    #   flat (ragged-N) fallback: R = 1, L = lane-tiled pixel chunk.
    # mf_ref   (3,3) SMEM: hed_from_rgb^T / log(1e-6)
    # mb2_ref  (3,3) SMEM: (-rgb_from_hed^T) * (-log(1e-6)*alpha)[None, :]
    # bias_ref (3,)  SMEM: (-rgb_from_hed^T) @ (-log(1e-6)*beta)
    # I/O may be bf16; all in-kernel math is f32 (EUP log/exp + VPU mixes).
    logx = [jnp.log(jnp.maximum(img_ref[c].astype(jnp.float32), 1e-6))
            for c in range(3)]

    # rgb -> stain: relu(Mf' @ log x)   (alpha/beta already folded into mb2/bias)
    r = []
    for c in range(3):
        s = (mf_ref[c, 0] * logx[0]
             + mf_ref[c, 1] * logx[1]
             + mf_ref[c, 2] * logx[2])
        r.append(jnp.maximum(s, 0.0))

    # stain -> rgb: rgb = clip(exp(bias + Mb2 @ r), 0, 1) == exp(min(.., 0))
    for c in range(3):
        log_rgb = (bias_ref[c]
                   + mb2_ref[c, 0] * r[0]
                   + mb2_ref[c, 1] * r[1]
                   + mb2_ref[c, 2] * r[2])
        out_ref[c] = jnp.exp(jnp.minimum(log_rgb, 0.0)).astype(out_ref.dtype)


def _pick_tile_rows(rows, tile_rows):
    """Rows per block (multiple of 8 unless it spans the full extent).

    Prefer >= 2 blocks -- and an even block count for large images -- so the
    "parallel" grid axis load-balances across v7x's two TensorCores.
    """
    if rows < 16:
        return rows                               # single full-extent block
    target_blocks = max(2, 2 * pl.cdiv(pl.cdiv(rows, tile_rows), 2))
    tm = pl.cdiv(pl.cdiv(rows, target_blocks), 8) * 8
    return min(tm, tile_rows)


def colour_augment(img, alpha, beta, rgb_from_hed, hed_from_rgb, *,
                   io_dtype=None, tile_rows=DEFAULT_TILE_ROWS):
    """img: (3, H, W) in [0,1]. alpha/beta: (3,) perturbation params.

    io_dtype: HBM I/O dtype for the kernel (default: img.dtype).  Pass
    jnp.bfloat16 to halve HBM traffic; in-kernel math stays f32.  The returned
    array is in io_dtype.
    """
    C, H, W = img.shape
    assert C == 3, "ColourAugment expects a 3-channel RGB image"
    in_dtype = img.dtype
    io_dtype = in_dtype if io_dtype is None else np.dtype(io_dtype)
    N = H * W

    # ---- host-side constant folding (drops full-width VPU multiplies) ----
    mf = (hed_from_rgb.T / LOG_ADJUST).astype(jnp.float32)        # (3,3)
    mbn = (-rgb_from_hed.T).astype(jnp.float32)                   # (3,3)
    alpha_s = ((-LOG_ADJUST) * alpha).astype(jnp.float32)         # (3,)
    beta_s = ((-LOG_ADJUST) * beta).astype(jnp.float32)           # (3,)
    mb2 = (mbn * alpha_s[None, :]).astype(jnp.float32)            # alpha folded
    bias = jnp.sum(mbn * beta_s[None, :], axis=1).astype(jnp.float32)  # beta folded

    x = img.reshape(3, N)
    if io_dtype != in_dtype:
        # TODO(synk): this cast is one extra XLA pass over the image; for the
        # full bf16 win the caller should already hold the image in io_dtype.
        x = x.astype(io_dtype)

    if N % LANES == 0:
        # Fast path: dense (rows, 128) lane planes, free reshape, no pad copy.
        rows = N // LANES
        x = x.reshape(3, rows, LANES)
        tm = _pick_tile_rows(rows, tile_rows)
        grid = (pl.cdiv(rows, tm),)
        block = (3, tm, LANES)
        index_map = lambda i: (0, i, 0)
    else:
        # Ragged pixel count: no host-side pad (was an extra full HBM
        # read+write).  Keep a flat (3, 1, N) layout; the block is lane-tiled
        # on the last axis and the ragged last block is masked by Pallas.
        x = x.reshape(3, 1, N)
        tn = min(tile_rows * LANES, pl.cdiv(N, LANES) * LANES)
        if tn >= N:
            tn = N                                # full extent is always legal
        grid = (pl.cdiv(N, tn),)
        block = (3, 1, tn)
        index_map = lambda i: (0, 0, i)

    # TODO(synk): if a profile shows exposed input DMA at the chosen tile, add
    # pipeline_mode=pl.Buffered(3) to the image BlockSpecs (~1.5 MiB/stream).
    out = pl.pallas_call(
        colour_augment_kernel,
        out_shape=jax.ShapeDtypeStruct(x.shape, io_dtype),
        grid=grid,
        in_specs=[
            pl.BlockSpec(memory_space=pltpu.MemorySpace.SMEM),   # mf   (3,3)
            pl.BlockSpec(memory_space=pltpu.MemorySpace.SMEM),   # mb2  (3,3)
            pl.BlockSpec(memory_space=pltpu.MemorySpace.SMEM),   # bias (3,)
            pl.BlockSpec(block, index_map),                      # image block
        ],
        out_specs=pl.BlockSpec(block, index_map),
        compiler_params=pltpu.CompilerParams(
            dimension_semantics=("parallel",),        # shards blocks across TCs
            vmem_limit_bytes=32 * 1024 * 1024,        # explicit, fits all gens
        ),
    )(mf, mb2, bias, x)

    return out.reshape(3, H, W)


def _reference(img, alpha, beta, rgb_from_hed, hed_from_rgb):
    """Pure-JAX f32 reimplementation of the PyTorch forward (for validation)."""
    c, h, w = img.shape
    x = jnp.maximum(img.reshape(3, -1).astype(jnp.float32), 1e-6)
    logs = jnp.log(x) / LOG_ADJUST
    stains = jnp.einsum('ij,jn->in', hed_from_rgb.T, logs,
                        precision=lax.Precision.HIGHEST)
    stains = jnp.maximum(stains, 0.0)
    stains = alpha[:, None] * stains + beta[:, None]
    log_rgb = -jnp.einsum('ij,jn->in', rgb_from_hed.T, stains * (-LOG_ADJUST),
                          precision=lax.Precision.HIGHEST)
    rgb = jnp.clip(jnp.exp(log_rgb), 0.0, 1.0)
    return rgb.reshape(c, h, w)


if __name__ == "__main__":
    sigma = 0.05
    key = jax.random.PRNGKey(0)
    k_img, k_img2, k_alpha, k_beta = jax.random.split(key, 4)

    rgb_from_hed, hed_from_rgb = _build_stain_matrices()

    # 'uniform' mode perturbation parameters, one per stain channel
    alpha = jax.random.uniform(k_alpha, (3,), dtype=jnp.float32,
                               minval=1.0 - sigma, maxval=1.0 + sigma)
    beta = jax.random.uniform(k_beta, (3,), dtype=jnp.float32,
                              minval=-sigma, maxval=sigma)

    # TODO(synk): the PyTorch forward asserts 0<=img<=1 at runtime; no clean
    # in-kernel assert equivalent, inputs here are constructed in-range.

    # (1) lane-aligned image -> packed (rows,128) path, >=2 "parallel" blocks.
    img = jax.random.uniform(k_img, (3, 64, 128), dtype=jnp.float32)
    out = jax.block_until_ready(
        colour_augment(img, alpha, beta, rgb_from_hed, hed_from_rgb))
    ref = _reference(img, alpha, beta, rgb_from_hed, hed_from_rgb)
    assert out.shape == img.shape and out.dtype == jnp.float32
    assert bool(jnp.all((out >= 0.0) & (out <= 1.0)))
    assert bool(jnp.allclose(out, ref, atol=1e-3, rtol=1e-3))

    # (2) narrow bf16 HBM I/O (f32 in-kernel math) -- the main bandwidth lever.
    out_bf16 = jax.block_until_ready(
        colour_augment(img, alpha, beta, rgb_from_hed, hed_from_rgb,
                       io_dtype=jnp.bfloat16))
    assert out_bf16.shape == img.shape and out_bf16.dtype == jnp.bfloat16
    assert bool(jnp.allclose(out_bf16.astype(jnp.float32), ref, atol=6e-2))

    # (3) ragged pixel count (H*W % 128 != 0) -> flat fallback, no host pad.
    img2 = jax.random.uniform(k_img2, (3, 24, 20), dtype=jnp.float32)
    out2 = jax.block_until_ready(
        colour_augment(img2, alpha, beta, rgb_from_hed, hed_from_rgb))
    ref2 = _reference(img2, alpha, beta, rgb_from_hed, hed_from_rgb)
    assert out2.shape == img2.shape and out2.dtype == jnp.float32
    assert bool(jnp.all((out2 >= 0.0) & (out2 <= 1.0)))
    assert bool(jnp.allclose(out2, ref2, atol=1e-3, rtol=1e-3))

    print("KERNEL_OK")
</pallas_src>

<mosaic_0001>
module attributes {stable_mosaic.version = 11 : i64} {
  func.func @colour_augment_kernel(%arg0: i32, %arg1: memref<3x3xf32, #tpu.memory_space<smem>>, %arg2: memref<3x3xf32, #tpu.memory_space<smem>>, %arg3: memref<3xf32, #tpu.memory_space<smem>>, %arg4: memref<3x32x128xf32, #tpu.memory_space<vmem>>, %arg5: memref<3x32x128xf32, #tpu.memory_space<vmem>>) attributes {dimension_semantics = [#tpu.dimension_semantics<parallel>], iteration_bounds = array<i64: 2>, scalar_prefetch = 0 : i64, scratch_operands = 0 : i64, tpu.core_type = #tpu.core_type<tc>, window_params = [{transform_indices = @transform_0, window_bounds = array<i64: 3, 3>}, {transform_indices = @transform_1, window_bounds = array<i64: 3, 3>}, {transform_indices = @transform_2, window_bounds = array<i64: 3>}, {transform_indices = @transform_3, window_bounds = array<i64: 3, 32, 128>}, {transform_indices = @transform_4, window_bounds = array<i64: 3, 32, 128>}]} {
    %c0 = arith.constant 0 : index
    %c0_0 = arith.constant 0 : index
    %c0_1 = arith.constant 0 : index
    %0 = vector.load %arg4[%c0, %c0_0, %c0_1] : memref<3x32x128xf32, #tpu.memory_space<vmem>>, vector<1x32x128xf32>
    %1 = vector.shape_cast %0 : vector<1x32x128xf32> to vector<32x128xf32>
    %cst = arith.constant 9.99999997E-7 : f32
    %2 = vector.broadcast %cst : f32 to vector<32x128xf32>
    %3 = arith.maximumf %1, %2 : vector<32x128xf32>
    %4 = math.log %3 : vector<32x128xf32>
    %c1 = arith.constant 1 : index
    %c0_2 = arith.constant 0 : index
    %c0_3 = arith.constant 0 : index
    %5 = vector.load %arg4[%c1, %c0_2, %c0_3] : memref<3x32x128xf32, #tpu.memory_space<vmem>>, vector<1x32x128xf32>
    %6 = vector.shape_cast %5 : vector<1x32x128xf32> to vector<32x128xf32>
    %cst_4 = arith.constant 9.99999997E-7 : f32
    %7 = vector.broadcast %cst_4 : f32 to vector<32x128xf32>
    %8 = arith.maximumf %6, %7 : vector<32x128xf32>
    %9 = math.log %8 : vector<32x128xf32>
    %c2 = arith.constant 2 : index
    %c0_5 = arith.constant 0 : index
    %c0_6 = arith.constant 0 : index
    %10 = vector.load %arg4[%c2, %c0_5, %c0_6] : memref<3x32x128xf32, #tpu.memory_space<vmem>>, vector<1x32x128xf32>
    %11 = vector.shape_cast %10 : vector<1x32x128xf32> to vector<32x128xf32>
    %cst_7 = arith.constant 9.99999997E-7 : f32
    %12 = vector.broadcast %cst_7 : f32 to vector<32x128xf32>
    %13 = arith.maximumf %11, %12 : vector<32x128xf32>
    %14 = math.log %13 : vector<32x128xf32>
    %c0_8 = arith.constant 0 : index
    %c0_9 = arith.constant 0 : index
    %15 = memref.load %arg1[%c0_8, %c0_9] : memref<3x3xf32, #tpu.memory_space<smem>>
    %16 = vector.broadcast %15 : f32 to vector<32x128xf32>
    %17 = arith.mulf %16, %4 : vector<32x128xf32>
    %c0_10 = arith.constant 0 : index
    %c1_11 = arith.constant 1 : index
    %18 = memref.load %arg1[%c0_10, %c1_11] : memref<3x3xf32, #tpu.memory_space<smem>>
    %19 = vector.broadcast %18 : f32 to vector<32x128xf32>
    %20 = arith.mulf %19, %9 : vector<32x128xf32>
    %21 = arith.addf %17, %20 : vector<32x128xf32>
    %c0_12 = arith.constant 0 : index
    %c2_13 = arith.constant 2 : index
    %22 = memref.load %arg1[%c0_12, %c2_13] : memref<3x3xf32, #tpu.memory_space<smem>>
    %23 = vector.broadcast %22 : f32 to vector<32x128xf32>
    %24 = arith.mulf %23, %14 : vector<32x128xf32>
    %25 = arith.addf %21, %24 : vector<32x128xf32>
    %cst_14 = arith.constant 0.000000e+00 : f32
    %26 = vector.broadcast %cst_14 : f32 to vector<32x128xf32>
    %27 = arith.maximumf %25, %26 : vector<32x128xf32>
    %c1_15 = arith.constant 1 : index
    %c0_16 = arith.constant 0 : index
    %28 = memref.load %arg1[%c1_15, %c0_16] : memref<3x3xf32, #tpu.memory_space<smem>>
    %29 = vector.broadcast %28 : f32 to vector<32x128xf32>
    %30 = arith.mulf %29, %4 : vector<32x128xf32>
    %c1_17 = arith.constant 1 : index
    %c1_18 = arith.constant 1 : index
    %31 = memref.load %arg1[%c1_17, %c1_18] : memref<3x3xf32, #tpu.memory_space<smem>>
    %32 = vector.broadcast %31 : f32 to vector<32x128xf32>
    %33 = arith.mulf %32, %9 : vector<32x128xf32>
    %34 = arith.addf %30, %33 : vector<32x128xf32>
    %c1_19 = arith.constant 1 : index
    %c2_20 = arith.constant 2 : index
    %35 = memref.load %arg1[%c1_19, %c2_20] : memref<3x3xf32, #tpu.memory_space<smem>>
    %36 = vector.broadcast %35 : f32 to vector<32x128xf32>
    %37 = arith.mulf %36, %14 : vector<32x128xf32>
    %38 = arith.addf %34, %37 : vector<32x128xf32>
    %cst_21 = arith.constant 0.000000e+00 : f32
    %39 = vector.broadcast %cst_21 : f32 to vector<32x128xf32>
    %40 = arith.maximumf %38, %39 : vector<32x128xf32>
    %c2_22 = arith.constant 2 : index
    %c0_23 = arith.constant 0 : index
    %41 = memref.load %arg1[%c2_22, %c0_23] : memref<3x3xf32, #tpu.memory_space<smem>>
    %42 = vector.broadcast %41 : f32 to vector<32x128xf32>
    %43 = arith.mulf %42, %4 : vector<32x128xf32>
    %c2_24 = arith.constant 2 : index
    %c1_25 = arith.constant 1 : index
    %44 = memref.load %arg1[%c2_24, %c1_25] : memref<3x3xf32, #tpu.memory_space<smem>>
    %45 = vector.broadcast %44 : f32 to vector<32x128xf32>
    %46 = arith.mulf %45, %9 : vector<32x128xf32>
    %47 = arith.addf %43, %46 : vector<32x128xf32>
    %c2_26 = arith.constant 2 : index
    %c2_27 = arith.constant 2 : index
    %48 = memref.load %arg1[%c2_26, %c2_27] : memref<3x3xf32, #tpu.memory_space<smem>>
    %49 = vector.broadcast %48 : f32 to vector<32x128xf32>
    %50 = arith.mulf %49, %14 : vector<32x128xf32>
    %51 = arith.addf %47, %50 : vector<32x128xf32>
    %cst_28 = arith.constant 0.000000e+00 : f32
    %52 = vector.broadcast %cst_28 : f32 to vector<32x128xf32>
    %53 = arith.maximumf %51, %52 : vector<32x128xf32>
    %c0_29 = arith.constant 0 : index
    %54 = memref.load %arg3[%c0_29] : memref<3xf32, #tpu.memory_space<smem>>
    %c0_30 = arith.constant 0 : index
    %c0_31 = arith.constant 0 : index
    %55 = memref.load %arg2[%c0_30, %c0_31] : memref<3x3xf32, #tpu.memory_space<smem>>
    %56 = vector.broadcast %55 : f32 to vector<32x128xf32>
    %57 = arith.mulf %56, %27 : vector<32x128xf32>
    %58 = vector.broadcast %54 : f32 to vector<32x128xf32>
    %59 = arith.addf %58, %57 : vector<32x128xf32>
    %c0_32 = arith.constant 0 : index
    %c1_33 = arith.constant 1 : index
    %60 = memref.load %arg2[%c0_32, %c1_33] : memref<3x3xf32, #tpu.memory_space<smem>>
    %61 = vector.broadcast %60 : f32 to vector<32x128xf32>
    %62 = arith.mulf %61, %40 : vector<32x128xf32>
    %63 = arith.addf %59, %62 : vector<32x128xf32>
    %c0_34 = arith.constant 0 : index
    %c2_35 = arith.constant 2 : index
    %64 = memref.load %arg2[%c0_34, %c2_35] : memref<3x3xf32, #tpu.memory_space<smem>>
    %65 = vector.broadcast %64 : f32 to vector<32x128xf32>
    %66 = arith.mulf %65, %53 : vector<32x128xf32>
    %67 = arith.addf %63, %66 : vector<32x128xf32>
    %cst_36 = arith.constant 0.000000e+00 : f32
    %68 = vector.broadcast %cst_36 : f32 to vector<32x128xf32>
    %69 = arith.minimumf %67, %68 : vector<32x128xf32>
    %70 = math.exp %69 : vector<32x128xf32>
    %c0_37 = arith.constant 0 : index
    %c0_38 = arith.constant 0 : index
    %c0_39 = arith.constant 0 : index
    %71 = vector.load %arg5[%c0_37, %c0_38, %c0_39] : memref<3x32x128xf32, #tpu.memory_space<vmem>>, vector<1x32x128xf32>
    %72 = vector.shape_cast %71 : vector<1x32x128xf32> to vector<32x128xf32>
    %73 = vector.shape_cast %70 : vector<32x128xf32> to vector<1x32x128xf32>
    tpu.vector_store %arg5[%c0_37, %c0_38, %c0_39], %73 {strides = array<i32>} : memref<3x32x128xf32, #tpu.memory_space<vmem>>, vector<1x32x128xf32>,
    %c1_40 = arith.constant 1 : index
    %74 = memref.load %arg3[%c1_40] : memref<3xf32, #tpu.memory_space<smem>>
    %c1_41 = arith.constant 1 : index
    %c0_42 = arith.constant 0 : index
    %75 = memref.load %arg2[%c1_41, %c0_42] : memref<3x3xf32, #tpu.memory_space<smem>>
    %76 = vector.broadcast %75 : f32 to vector<32x128xf32>
    %77 = arith.mulf %76, %27 : vector<32x128xf32>
    %78 = vector.broadcast %74 : f32 to vector<32x128xf32>
    %79 = arith.addf %78, %77 : vector<32x128xf32>
    %c1_43 = arith.constant 1 : index
    %c1_44 = arith.constant 1 : index
    %80 = memref.load %arg2[%c1_43, %c1_44] : memref<3x3xf32, #tpu.memory_space<smem>>
    %81 = vector.broadcast %80 : f32 to vector<32x128xf32>
    %82 = arith.mulf %81, %40 : vector<32x128xf32>
    %83 = arith.addf %79, %82 : vector<32x128xf32>
    %c1_45 = arith.constant 1 : index
    %c2_46 = arith.constant 2 : index
    %84 = memref.load %arg2[%c1_45, %c2_46] : memref<3x3xf32, #tpu.memory_space<smem>>
    %85 = vector.broadcast %84 : f32 to vector<32x128xf32>
    %86 = arith.mulf %85, %53 : vector<32x128xf32>
    %87 = arith.addf %83, %86 : vector<32x128xf32>
    %cst_47 = arith.constant 0.000000e+00 : f32
    %88 = vector.broadcast %cst_47 : f32 to vector<32x128xf32>
    %89 = arith.minimumf %87, %88 : vector<32x128xf32>
    %90 = math.exp %89 : vector<32x128xf32>
    %c1_48 = arith.constant 1 : index
    %c0_49 = arith.constant 0 : index
    %c0_50 = arith.constant 0 : index
    %91 = vector.load %arg5[%c1_48, %c0_49, %c0_50] : memref<3x32x128xf32, #tpu.memory_space<vmem>>, vector<1x32x128xf32>
    %92 = vector.shape_cast %91 : vector<1x32x128xf32> to vector<32x128xf32>
    %93 = vector.shape_cast %90 : vector<32x128xf32> to vector<1x32x128xf32>
    tpu.vector_store %arg5[%c1_48, %c0_49, %c0_50], %93 {strides = array<i32>} : memref<3x32x128xf32, #tpu.memory_space<vmem>>, vector<1x32x128xf32>,
    %c2_51 = arith.constant 2 : index
    %94 = memref.load %arg3[%c2_51] : memref<3xf32, #tpu.memory_space<smem>>
    %c2_52 = arith.constant 2 : index
    %c0_53 = arith.constant 0 : index
    %95 = memref.load %arg2[%c2_52, %c0_53] : memref<3x3xf32, #tpu.memory_space<smem>>
    %96 = vector.broadcast %95 : f32 to vector<32x128xf32>
    %97 = arith.mulf %96, %27 : vector<32x128xf32>
    %98 = vector.broadcast %94 : f32 to vector<32x128xf32>
    %99 = arith.addf %98, %97 : vector<32x128xf32>
    %c2_54 = arith.constant 2 : index
    %c1_55 = arith.constant 1 : index
    %100 = memref.load %arg2[%c2_54, %c1_55] : memref<3x3xf32, #tpu.memory_space<smem>>
    %101 = vector.broadcast %100 : f32 to vector<32x128xf32>
    %102 = arith.mulf %101, %40 : vector<32x128xf32>
    %103 = arith.addf %99, %102 : vector<32x128xf32>
    %c2_56 = arith.constant 2 : index
    %c2_57 = arith.constant 2 : index
    %104 = memref.load %arg2[%c2_56, %c2_57] : memref<3x3xf32, #tpu.memory_space<smem>>
    %105 = vector.broadcast %104 : f32 to vector<32x128xf32>
    %106 = arith.mulf %105, %53 : vector<32x128xf32>
    %107 = arith.addf %103, %106 : vector<32x128xf32>
    %cst_58 = arith.constant 0.000000e+00 : f32
    %108 = vector.broadcast %cst_58 : f32 to vector<32x128xf32>
    %109 = arith.minimumf %107, %108 : vector<32x128xf32>
    %110 = math.exp %109 : vector<32x128xf32>
    %c2_59 = arith.constant 2 : index
    %c0_60 = arith.constant 0 : index
    %c0_61 = arith.constant 0 : index
    %111 = vector.load %arg5[%c2_59, %c0_60, %c0_61] : memref<3x32x128xf32, #tpu.memory_space<vmem>>, vector<1x32x128xf32>
    %112 = vector.shape_cast %111 : vector<1x32x128xf32> to vector<32x128xf32>
    %113 = vector.shape_cast %110 : vector<32x128xf32> to vector<1x32x128xf32>
    tpu.vector_store %arg5[%c2_59, %c0_60, %c0_61], %113 {strides = array<i32>} : memref<3x32x128xf32, #tpu.memory_space<vmem>>, vector<1x32x128xf32>,
    return
  }
  func.func @transform_0(%arg0: i32) -> (i32, i32) {
    %c0_i32 = arith.constant 0 : i32
    %c0_i32_0 = arith.constant 0 : i32
    %c0_i32_1 = arith.constant 0 : i32
    return %c0_i32, %c0_i32_0 : i32, i32
  }
  func.func @transform_1(%arg0: i32) -> (i32, i32) {
    %c0_i32 = arith.constant 0 : i32
    %c0_i32_0 = arith.constant 0 : i32
    %c0_i32_1 = arith.constant 0 : i32
    return %c0_i32, %c0_i32_0 : i32, i32
  }
  func.func @transform_2(%arg0: i32) -> i32 {
    %c0_i32 = arith.constant 0 : i32
    %c0_i32_0 = arith.constant 0 : i32
    return %c0_i32 : i32
  }
  func.func @transform_3(%arg0: i32) -> (i32, i32, i32) {
    %c0_i32 = arith.constant 0 : i32
    %c0_i32_0 = arith.constant 0 : i32
    %c0_i32_1 = arith.constant 0 : i32
    return %c0_i32, %arg0, %c0_i32_0 : i32, i32, i32
  }
  func.func @transform_4(%arg0: i32) -> (i32, i32, i32) {
    %c0_i32 = arith.constant 0 : i32
    %c0_i32_0 = arith.constant 0 : i32
    %c0_i32_1 = arith.constant 0 : i32
    return %c0_i32, %arg0, %c0_i32_0 : i32, i32, i32
  }
}

</mosaic_0001>

<llo_original>
// kernel: tpu_custom_call.1
$region0: #{tpu_custom_call.1}
  #allocation0 [shape = 'u32[]', space=smem, size = 0x4, offset = 0x4, fixed_abs, tag = 'smem constant byte address 0x4 - core index']
  #allocation1 [shape = 'u32[72,128]{1,0:T(1,128)}', space=vmem, size = 0x9000, scoped, tag = 'internal scratch']
  #allocation12 [shape = 's32[]', space=sflag, size = 0x4, offset = 0, fixed_abs, tag = 'sflag constant byte address 0x0 - dummy sync flag']
  #allocation14 [shape = 's32[]', space=sflag, size = 0x4, offset = 0, fixed_abs, tag = 'sflag constant byte address 0x0 - dummy sync flag']
  %s0 = inlined_call_operand.hbm [shape: f32[3,3], index: 0, kind: input, shape index: {}]
  %s1 = inlined_call_operand.hbm [shape: f32[3,3], index: 1, kind: input, shape index: {}]
  %s2 = inlined_call_operand.vmem [shape: f32[3], index: 2, kind: input, shape index: {}]
  %s3 = inlined_call_operand.hbm [shape: f32[3,64,128], index: 3, kind: input, shape index: {}]
  %s4 = inlined_call_operand.hbm [shape: f32[3,64,128], index: 4, kind: output, shape index: {}]
  %s5 = sld [smem:[#allocation0]]
  $region65: #{tpu_custom_call.1} parent=0
    _
  %s7 = ssub.s32 1, %s5
  %s8 = scalar_select 0, %s7, %s5
  $region1: #{tpu_custom_call.1} parent=0
    #allocation2 [shape = 'u8[2048]{0}', space=smem, size = 0x800, scoped, tag = 'input window, operand 0, single buffered']
    #allocation3 [shape = 's32[2]{0}', space=sflag, size = 0x8, scoped, tag = 'scoped memory for tpu_custom_call.1']
    #allocation4 [shape = 's32[2]{0}', space=sflag, size = 0x8, scoped, tag = 'scoped memory for tpu_custom_call.1']
    #allocation5 [shape = 's32[2]{0}', space=sflag, size = 0x8, scoped, tag = 'scoped memory for tpu_custom_call.1']
    #allocation6 [shape = 's32[2]{0}', space=sflag, size = 0x8, scoped, tag = 'scoped memory for tpu_custom_call.1']
    #allocation7 [shape = 'u8[2048]{0}', space=smem, size = 0x800, scoped, tag = 'input window, operand 1, single buffered']
    #allocation8 [shape = 's32[1]{0}', space=sflag, size = 0x4, scoped, tag = 'scoped memory for tpu_custom_call.1']
    #allocation9 [shape = 'u8[512]{0}', space=smem, size = 0x200, scoped, tag = 'input window, operand 2, single buffered']
    #allocation10 [shape = 'u8[98304]{0}', space=vmem, size = 0x18000, scoped, tag = 'input window, operand 3']
    #allocation11 [shape = 'u8[98304]{0}', space=vmem, size = 0x18000, scoped, tag = 'output window, operand 0']
    %9 = vsyncpa [#allocation5], 0
    %10 = vsyncpa [#allocation8], 0
    %11 = vsyncpa [#allocation6], 0
    %12 = vsyncpa [#allocation3], 0
    %s13 = scalar_lea.sflag [#allocation3], 1
    %14 = vsyncpa %s13, 0
    %15 = vsyncpa [#allocation4], 0
    %s16 = scalar_lea.sflag [#allocation4], 1
    %17 = vsyncpa %s16, 0
    loop: start=0, step=1, limit=4
    $region2: #{tpu_custom_call.1} parent=1 // loop_pre_header
      _
    $region3: #{tpu_custom_call.1} parent=1 // loop_header
      %s19 = sphi 0, %s23
      %p20 = scmp.ge.s32.totalorder %s19, 4
      %s27 = sphi 0, %s27
      %s29 = sphi 0, %s27
      %s30 = sphi 0, %s29
      %s44 = sphi 0, %s30
      %s48 = sphi 0, %s48
      %s50 = sphi 0, %s48
      %s51 = sphi 0, %s50
      %s65 = sphi 0, %s51
      %s69 = sphi 0, %s69
      %s71 = sphi 0, %s69
      %s72 = sphi 0, %s71
      %s86 = sphi 0, %s72
      %s92 = sphi 0, %s94
      %s95 = sphi 0, %s92
      %s96 = sphi 0, %s95
      %s112 = sphi 0, %s96
      %s118 = sphi 0, %s120
      %s121 = sphi 0, %s118
      %s122 = sphi 0, %s121
      %s138 = sphi 0, %s122
    $region4: #{tpu_custom_call.1} parent=1 // loop_header_branch
      %22 = sbr.rel (%p20) target = $region8
    $region5: #{tpu_custom_call.1} parent=1 // loop_body
      %s24 = ssub.s32 %s19, 1
      %s25 = ssub.s32 %s19, 2
      %s26 = sadd.s32 %s19, 1
      %s28 = sadd.s32 %s27, 1
      %p31 = scmp.eq.s32.totalorder %s19, 1
      %p32 = scmp.ne.s32.totalorder %s27, %s29
      %p33 = scmp.eq.s32.totalorder %s19, 0
      %p34 = por %p32, %p33
      %p35 = scmp.ne.s32.totalorder %s27, %s29
      %p36 = scmp.eq.s32.totalorder %s24, 1
      %p37 = por %p35, %p36
      %p38 = scmp.ne.s32.totalorder %s29, %s30
      %p39 = scmp.eq.s32.totalorder %s24, 0
      %p40 = por %p38, %p39
      %p41 = scmp.ne.s32.totalorder %s29, %s30
      %p42 = scmp.eq.s32.totalorder %s25, 1
      %p43 = por %p41, %p42
      %p45 = scmp.ne.s32.totalorder %s30, %s44
      %p46 = scmp.eq.s32.totalorder %s25, 0
      %p47 = por %p45, %p46
      %s49 = sadd.s32 %s48, 1
      %p52 = scmp.eq.s32.totalorder %s19, 1
      %p53 = scmp.ne.s32.totalorder %s48, %s50
      %p54 = scmp.eq.s32.totalorder %s19, 0
      %p55 = por %p53, %p54
      %p56 = scmp.ne.s32.totalorder %s48, %s50
      %p57 = scmp.eq.s32.totalorder %s24, 1
      %p58 = por %p56, %p57
      %p59 = scmp.ne.s32.totalorder %s50, %s51
      %p60 = scmp.eq.s32.totalorder %s24, 0
      %p61 = por %p59, %p60
      %p62 = scmp.ne.s32.totalorder %s50, %s51
      %p63 = scmp.eq.s32.totalorder %s25, 1
      %p64 = por %p62, %p63
      %p66 = scmp.ne.s32.totalorder %s51, %s65
      %p67 = scmp.eq.s32.totalorder %s25, 0
      %p68 = por %p66, %p67
      %s70 = sadd.s32 %s69, 1
      %p73 = scmp.eq.s32.totalorder %s19, 1
      %p74 = scmp.ne.s32.totalorder %s69, %s71
      %p75 = scmp.eq.s32.totalorder %s19, 0
      %p76 = por %p74, %p75
      %p77 = scmp.ne.s32.totalorder %s69, %s71
      %p78 = scmp.eq.s32.totalorder %s24, 1
      %p79 = por %p77, %p78
      %p80 = scmp.ne.s32.totalorder %s71, %s72
      %p81 = scmp.eq.s32.totalorder %s24, 0
      %p82 = por %p80, %p81
      %p83 = scmp.ne.s32.totalorder %s71, %s72
      %p84 = scmp.eq.s32.totalorder %s25, 1
      %p85 = por %p83, %p84
      %p87 = scmp.ne.s32.totalorder %s72, %s86
      %p88 = scmp.eq.s32.totalorder %s25, 0
      %p89 = por %p87, %p88
      %s90 = ssub.s32 %s19, %s26
      %p91 = scmp.eq.s32.totalorder %s90, 0
      %s93 = sadd.s32 %s92, 1
      %s94 = scalar_select %p91, %s92, %s93
      %p97 = pneg %p91
      %p98 = scmp.eq.s32.totalorder %s19, 1
      %p99 = por %p97, %p98
      %p100 = scmp.ne.s32.totalorder %s92, %s95
      %p101 = scmp.eq.s32.totalorder %s19, 0
      %p102 = por %p100, %p101
      %p103 = scmp.ne.s32.totalorder %s92, %s95
      %p104 = scmp.eq.s32.totalorder %s24, 1
      %p105 = por %p103, %p104
      %p106 = scmp.ne.s32.totalorder %s95, %s96
      %p107 = scmp.eq.s32.totalorder %s24, 0
      %p108 = por %p106, %p107
      %p109 = scmp.ne.s32.totalorder %s95, %s96
      %p110 = scmp.eq.s32.totalorder %s25, 1
      %p111 = por %p109, %p110
      %p113 = scmp.ne.s32.totalorder %s96, %s112
      %p114 = scmp.eq.s32.totalorder %s25, 0
      %p115 = por %p113, %p114
      %s116 = ssub.s32 %s19, %s26
      %p117 = scmp.eq.s32.totalorder %s116, 0
      %s119 = sadd.s32 %s118, 1
      %s120 = scalar_select %p117, %s118, %s119
      %p123 = pneg %p117
      %p124 = scmp.eq.s32.totalorder %s19, 1
      %p125 = por %p123, %p124
      %p126 = scmp.ne.s32.totalorder %s118, %s121
      %p127 = scmp.eq.s32.totalorder %s19, 0
      %p128 = por %p126, %p127
      %p129 = scmp.ne.s32.totalorder %s118, %s121
      %p130 = scmp.eq.s32.totalorder %s24, 1
      %p131 = por %p129, %p130
      %p132 = scmp.ne.s32.totalorder %s121, %s122
      %p133 = scmp.eq.s32.totalorder %s24, 0
      %p134 = por %p132, %p133
      %p135 = scmp.ne.s32.totalorder %s121, %s122
      %p136 = scmp.eq.s32.totalorder %s25, 1
      %p137 = por %p135, %p136
      %p139 = scmp.ne.s32.totalorder %s122, %s138
      %p140 = scmp.eq.s32.totalorder %s25, 0
      %p141 = por %p139, %p140
      %p142 = scmp.le.s32.totalorder 1, %s19
      %p143 = scmp.lt.s32.totalorder %s19, 3
      %p144 = pnand %p142, %p143
      %p145 = pneg %p144
      // Predicated region
      $region9: #{tpu_custom_call.1} parent=5 // pred_check
        _
      $region10: #{tpu_custom_call.1} parent=5 // pred_check_branch
        %147 = sbr.rel (%p144) target = $region12
      $region11: #{tpu_custom_call.1} parent=5 // pred_region
        %s148 = ssub.s32 %s19, 1
        // Predicated region
        $region13: #{tpu_custom_call.1} parent=11 // pred_check
          %p149 = pneg %p40
        $region14: #{tpu_custom_call.1} parent=11 // pred_check_branch
          %151 = sbr.rel (%p149) target = $region16
        $region15: #{tpu_custom_call.1} parent=11 // pred_region
          %153 = vsyncadd [#allocation5], 0
          %s155 = sshll.u32 %s0, 4
          %s156 = int_to_ptr.hbm [resolvable:$true] %s155
          %158 = dma.hbm_to_smem %s156, 64, [#allocation2], [#allocation5]
        $region16: #{tpu_custom_call.1} parent=11 // pred_fallthru
          _
        // Predicated region
        $region17: #{tpu_custom_call.1} parent=11 // pred_check
          %p159 = pneg %p61
        $region18: #{tpu_custom_call.1} parent=11 // pred_check_branch
          %161 = sbr.rel (%p159) target = $region20
        $region19: #{tpu_custom_call.1} parent=11 // pred_region
          %163 = vsyncadd [#allocation8], 0
          %s165 = sshll.u32 %s1, 4
          %s166 = int_to_ptr.hbm [resolvable:$true] %s165
          %168 = dma.hbm_to_smem %s166, 64, [#allocation7], [#allocation8]
        $region20: #{tpu_custom_call.1} parent=11 // pred_fallthru
          _
        // Predicated region
        $region21: #{tpu_custom_call.1} parent=11 // pred_check
          %p169 = pneg %p82
        $region22: #{tpu_custom_call.1} parent=11 // pred_check_branch
          %171 = sbr.rel (%p169) target = $region24
        $region23: #{tpu_custom_call.1} parent=11 // pred_region
          %173 = vsyncadd [#allocation6], 0
          %s175 = sshll.u32 %s2, 4
          %s176 = int_to_ptr.vmem [resolvable:$true] %s175
          %178 = dma.vmem_to_smem %s176, 16, [#allocation9], [#allocation6]
        $region24: #{tpu_custom_call.1} parent=11 // pred_fallthru
          _
      $region12: #{tpu_custom_call.1} parent=5 // pred_fallthru
        _
      %p179 = scmp.lt.s32.totalorder %s19, 2
      // Predicated region
      $region25: #{tpu_custom_call.1} parent=5 // pred_check
        %p180 = pneg %p179
      $region26: #{tpu_custom_call.1} parent=5 // pred_check_branch
        %182 = sbr.rel (%p180) target = $region28
      $region27: #{tpu_custom_call.1} parent=5 // pred_region
        // Predicated region
        $region29: #{tpu_custom_call.1} parent=27 // pred_check
          %p183 = pneg %p102
        $region30: #{tpu_custom_call.1} parent=27 // pred_check_branch
          %185 = sbr.rel (%p183) target = $region32
        $region31: #{tpu_custom_call.1} parent=27 // pred_region
          #allocation13 [shape = 'u32[6]{0}', space=smem, size = 0x18, scoped, tag = 'DMA stride descriptor']
          %s186 = sand.u32 %s92, 1
          %s187 = scalar_lea.sflag [#allocation3], %s186
          %s188 = sand.u32 %s92, 1
          %s189 = smul.addr %s188, 96
          %s190 = scalar_lea.vmem [#allocation10], %s189
          %s191 = smul.u32 4, %s19
          %193 = vsyncadd %s187, 0
          %s194 = smul.addr %s191, 8
          %s195 = scalar_lea.hbm %s3, %s194
          %s197 = sshll.u32 1, 14
          %s198 = sxor.u32 4294967295, %s197
          %s200 = sld [smem:[#allocation0]]
          %s201 = sadd.s32 2, %s200
          %s203 = sshll.u32 7, 26
          %s204 = sxor.u32 4294967295, %s203
          %s205 = sand.u32 0, %s204
          %s206 = sshll.u32 %s201, 26
          %s207 = sor.u32 %s205, %s206
          %s208 = sshll.u32 %s195, 4
          %s209 = int_to_ptr.hbm [resolvable:$true] %s208
          %s210 = sshll.u32 %s190, 4
          %s211 = int_to_ptr.vmem [resolvable:$true] %s210
          %217 = sst [smem:[#allocation13]] 1024
          %s218 = scalar_lea.smem [#allocation13], 1
          %219 = sst [smem:[%s218]] 512
          %s220 = scalar_lea.smem [#allocation13], 2
          %221 = sst [smem:[%s220]] 4
          %s222 = scalar_lea.smem [#allocation13], 3
          %223 = sst [smem:[%s222]] 128
          %s224 = scalar_lea.smem [#allocation13], 4
          %225 = sst [smem:[%s224]] 128
          %s226 = scalar_lea.smem [#allocation13], 5
          %227 = sst [smem:[%s226]] 8
          %229 = dma.general %s209, 1536, %s211, %s187, [#allocation12], [#allocation13], %s207, 0
        $region32: #{tpu_custom_call.1} parent=27 // pred_fallthru
          _
      $region28: #{tpu_custom_call.1} parent=5 // pred_fallthru
        _
      %p230 = scmp.le.s32.totalorder 1, %s19
      %p231 = scmp.lt.s32.totalorder %s19, 3
      %p232 = pnand %p230, %p231
      %p233 = pneg %p232
      // Predicated region
      $region33: #{tpu_custom_call.1} parent=5 // pred_check
        _
      $region34: #{tpu_custom_call.1} parent=5 // pred_check_branch
        %235 = sbr.rel (%p232) target = $region36
      $region35: #{tpu_custom_call.1} parent=5 // pred_region
        %s236 = ssub.s32 %s19, 1
        // Predicated region
        $region37: #{tpu_custom_call.1} parent=35 // pred_check
          %p237 = pneg %p40
        $region38: #{tpu_custom_call.1} parent=35 // pred_check_branch
          %239 = sbr.rel (%p237) target = $region40
        $region39: #{tpu_custom_call.1} parent=35 // pred_region
          %241 = dma.done [#allocation5], 64
        $region40: #{tpu_custom_call.1} parent=35 // pred_fallthru
          _
        // Predicated region
        $region41: #{tpu_custom_call.1} parent=35 // pred_check
          %p242 = pneg %p61
        $region42: #{tpu_custom_call.1} parent=35 // pred_check_branch
          %244 = sbr.rel (%p242) target = $region44
        $region43: #{tpu_custom_call.1} parent=35 // pred_region
          %246 = dma.done [#allocation8], 64
        $region44: #{tpu_custom_call.1} parent=35 // pred_fallthru
          _
        // Predicated region
        $region45: #{tpu_custom_call.1} parent=35 // pred_check
          %p247 = pneg %p82
        $region46: #{tpu_custom_call.1} parent=35 // pred_check_branch
          %249 = sbr.rel (%p247) target = $region48
        $region47: #{tpu_custom_call.1} parent=35 // pred_region
          %251 = dma.done [#allocation6], 16
        $region48: #{tpu_custom_call.1} parent=35 // pred_fallthru
          _
        %s252 = sand.u32 %s95, 1
        %s253 = scalar_lea.sflag [#allocation3], %s252
        %s254 = sand.u32 %s95, 1
        %s255 = smul.addr %s254, 96
        %s256 = scalar_lea.vmem [#allocation10], %s255
        // Predicated region
        $region49: #{tpu_custom_call.1} parent=35 // pred_check
          %p257 = pneg %p108
        $region50: #{tpu_custom_call.1} parent=35 // pred_check_branch
          %259 = sbr.rel (%p257) target = $region52
        $region51: #{tpu_custom_call.1} parent=35 // pred_region
          %261 = dma.done %s253, 1536
        $region52: #{tpu_custom_call.1} parent=35 // pred_fallthru
          _
        %262 = sfence
        %p263 = pneg %p40
        %p264 = pneg %p37
        %p265 = pneg %p61
        %p266 = pneg %p58
        %p267 = pneg %p82
        %p268 = pneg %p79
        %s269 = sand.u32 %s95, 1
        %s270 = scalar_lea.sflag [#allocation3], %s269
        %s271 = sand.u32 %s95, 1
        %s272 = smul.addr %s271, 96
        %s273 = scalar_lea.vmem [#allocation10], %s272
        %p274 = pneg %p108
        %p275 = pneg %p105
        %p276 = pneg %p134
        %p277 = pneg %p131
        %s278 = sand.u32 %s121, 1
        %s279 = scalar_lea.sflag [#allocation4], %s278
        %s280 = sand.u32 %s121, 1
        %s281 = smul.addr %s280, 96
        %s282 = scalar_lea.vmem [#allocation11], %s281
        %s283 = smul.u32 4, %s24
        %s284 = smul.u32 4, %s24
        %v285 = vld [vmem:[%s256] sm:$0xff]
        %v286 = vld [vmem:[%s256 + $0x8] sm:$0xff]
        %v287 = vld [vmem:[%s256 + $0x10] sm:$0xff]
        %v288 = vld [vmem:[%s256 + $0x18] sm:$0xff]
        %v289 = vmax.f32 %v285, 1e-06
        %v290 = vmax.f32 %v286, 1e-06
        %v291 = vmax.f32 %v287, 1e-06
        %v292 = vmax.f32 %v288, 1e-06
        %v293 = vlog2.pop %v289
        %v294 = vmul.f32 %v293, 0.6931472
        %v295 = vlog2.pop %v290
        %v296 = vmul.f32 %v295, 0.6931472
        %v297 = vlog2.pop %v291
        %v298 = vmul.f32 %v297, 0.6931472
        %v299 = vlog2.pop %v292
        %v300 = vmul.f32 %v299, 0.6931472
        %s301 = scalar_lea.vmem %s256, 32 [#allocation10]
        %v302 = vld [vmem:[%s301] sm:$0xff]
        %v303 = vld [vmem:[%s301 + $0x8] sm:$0xff]
        %v304 = vld [vmem:[%s301 + $0x10] sm:$0xff]
        %v305 = vld [vmem:[%s301 + $0x18] sm:$0xff]
        %v306 = vmax.f32 %v302, 1e-06
        %v307 = vmax.f32 %v303, 1e-06
        %v308 = vmax.f32 %v304, 1e-06
        %v309 = vmax.f32 %v305, 1e-06
        %v310 = vlog2.pop %v306
        %v311 = vmul.f32 %v310, 0.6931472
        %v312 = vlog2.pop %v307
        %v313 = vmul.f32 %v312, 0.6931472
        %v314 = vlog2.pop %v308
        %v315 = vmul.f32 %v314, 0.6931472
        %v316 = vlog2.pop %v309
        %v317 = vmul.f32 %v316, 0.6931472
        %s318 = scalar_lea.vmem %s256, 64 [#allocation10]
        %v319 = vld [vmem:[%s318] sm:$0xff]
        %v320 = vld [vmem:[%s318 + $0x8] sm:$0xff]
        %v321 = vld [vmem:[%s318 + $0x10] sm:$0xff]
        %v322 = vld [vmem:[%s318 + $0x18] sm:$0xff]
        %v323 = vmax.f32 %v319, 1e-06
        %v324 = vmax.f32 %v320, 1e-06
        %v325 = vmax.f32 %v321, 1e-06
        %v326 = vmax.f32 %v322, 1e-06
        %v327 = vlog2.pop %v323
        %v328 = vmul.f32 %v327, 0.6931472
        %v329 = vlog2.pop %v324
        %v330 = vmul.f32 %v329, 0.6931472
        %v331 = vlog2.pop %v325
        %v332 = vmul.f32 %v331, 0.6931472
        %v333 = vlog2.pop %v326
        %v334 = vmul.f32 %v333, 0.6931472
        %s335 = sld [smem:[#allocation2]]
        %v336 = vstv %s335
        %v337 = vmul.f32 %v336, %v294
        %v338 = vmul.f32 %v336, %v296
        %v339 = vmul.f32 %v336, %v298
        %v340 = vmul.f32 %v336, %v300
        %s341 = sld [smem:[#allocation2 + $0x1]]
        %v342 = vstv %s341
        %v343 = vmul.f32 %v342, %v311
        %v344 = vmul.f32 %v342, %v313
        %v345 = vmul.f32 %v342, %v315
        %v346 = vmul.f32 %v342, %v317
        %v347 = vadd.f32 %v337, %v343
        %v348 = vadd.f32 %v338, %v344
        %v349 = vadd.f32 %v339, %v345
        %v350 = vadd.f32 %v340, %v346
        %s351 = sld [smem:[#allocation2 + $0x2]]
        %v352 = vstv %s351
        %v353 = vmul.f32 %v352, %v328
        %v354 = vmul.f32 %v352, %v330
        %v355 = vmul.f32 %v352, %v332
        %v356 = vmul.f32 %v352, %v334
        %v357 = vadd.f32 %v347, %v353
        %v358 = vadd.f32 %v348, %v354
        %v359 = vadd.f32 %v349, %v355
        %v360 = vadd.f32 %v350, %v356
        %v361 = vmax.f32 %v357, 0.0
        %v362 = vmax.f32 %v358, 0.0
        %v363 = vmax.f32 %v359, 0.0
        %v364 = vmax.f32 %v360, 0.0
        %s365 = sld [smem:[#allocation2 + $0x80]]
        %v366 = vstv %s365
        %v367 = vmul.f32 %v366, %v294
        %v368 = vmul.f32 %v366, %v296
        %v369 = vmul.f32 %v366, %v298
        %v370 = vmul.f32 %v366, %v300
        %s371 = sld [smem:[#allocation2 + $0x81]]
        %v372 = vstv %s371
        %v373 = vmul.f32 %v372, %v311
        %v374 = vmul.f32 %v372, %v313
        %v375 = vmul.f32 %v372, %v315
        %v376 = vmul.f32 %v372, %v317
        %v377 = vadd.f32 %v367, %v373
        %v378 = vadd.f32 %v368, %v374
        %v379 = vadd.f32 %v369, %v375
        %v380 = vadd.f32 %v370, %v376
        %s381 = sld [smem:[#allocation2 + $0x82]]
        %v382 = vstv %s381
        %v383 = vmul.f32 %v382, %v328
        %v384 = vmul.f32 %v382, %v330
        %v385 = vmul.f32 %v382, %v332
        %v386 = vmul.f32 %v382, %v334
        %v387 = vadd.f32 %v377, %v383
        %v388 = vadd.f32 %v378, %v384
        %v389 = vadd.f32 %v379, %v385
        %v390 = vadd.f32 %v380, %v386
        %v391 = vmax.f32 %v387, 0.0
        %v392 = vmax.f32 %v388, 0.0
        %v393 = vmax.f32 %v389, 0.0
        %v394 = vmax.f32 %v390, 0.0
        %s395 = sld [smem:[#allocation2 + $0x100]]
        %v396 = vstv %s395
        %v397 = vmul.f32 %v396, %v294
        %v398 = vmul.f32 %v396, %v296
        %v399 = vmul.f32 %v396, %v298
        %v400 = vmul.f32 %v396, %v300
        %s401 = sld [smem:[#allocation2 + $0x101]]
        %v402 = vstv %s401
        %v403 = vmul.f32 %v402, %v311
        %v404 = vmul.f32 %v402, %v313
        %v405 = vmul.f32 %v402, %v315
        %v406 = vmul.f32 %v402, %v317
        %v407 = vadd.f32 %v397, %v403
        %v408 = vadd.f32 %v398, %v404
        %v409 = vadd.f32 %v399, %v405
        %v410 = vadd.f32 %v400, %v406
        %s411 = sld [smem:[#allocation2 + $0x102]]
        %v412 = vstv %s411
        %v413 = vmul.f32 %v412, %v328
        %v414 = vmul.f32 %v412, %v330
        %v415 = vmul.f32 %v412, %v332
        %v416 = vmul.f32 %v412, %v334
        %v417 = vadd.f32 %v407, %v413
        %v418 = vadd.f32 %v408, %v414
        %v419 = vadd.f32 %v409, %v415
        %v420 = vadd.f32 %v410, %v416
        %v421 = vmax.f32 %v417, 0.0
        %v422 = vmax.f32 %v418, 0.0
        %v423 = vmax.f32 %v419, 0.0
        %v424 = vmax.f32 %v420, 0.0
        %s425 = sld [smem:[#allocation9]]
        %s426 = sld [smem:[#allocation7]]
        %v427 = vstv %s426
        %v428 = vmul.f32 %v427, %v361
        %v429 = vmul.f32 %v427, %v362
        %v430 = vmul.f32 %v427, %v363
        %v431 = vmul.f32 %v427, %v364
        %v432 = vstv %s425
        %v433 = vadd.f32 %v432, %v428
        %v434 = vadd.f32 %v432, %v429
        %v435 = vadd.f32 %v432, %v430
        %v436 = vadd.f32 %v432, %v431
        %s437 = sld [smem:[#allocation7 + $0x1]]
        %v438 = vstv %s437
        %v439 = vmul.f32 %v438, %v391
        %v440 = vmul.f32 %v438, %v392
        %v441 = vmul.f32 %v438, %v393
        %v442 = vmul.f32 %v438, %v394
        %v443 = vadd.f32 %v433, %v439
        %v444 = vadd.f32 %v434, %v440
        %v445 = vadd.f32 %v435, %v441
        %v446 = vadd.f32 %v436, %v442
        %s447 = sld [smem:[#allocation7 + $0x2]]
        %v448 = vstv %s447
        %v449 = vmul.f32 %v448, %v421
        %v450 = vmul.f32 %v448, %v422
        %v451 = vmul.f32 %v448, %v423
        %v452 = vmul.f32 %v448, %v424
        %v453 = vadd.f32 %v443, %v449
        %v454 = vadd.f32 %v444, %v450
        %v455 = vadd.f32 %v445, %v451
        %v456 = vadd.f32 %v446, %v452
        %v457 = vmin.f32 %v453, 0.0
        %v458 = vmin.f32 %v454, 0.0
        %v459 = vmin.f32 %v455, 0.0
        %v460 = vmin.f32 %v456, 0.0
        %v461 = vmul.f32 %v457, 1.442695
        %v462 = vpow.pop %v461
        %v463 = vmul.f32 %v458, 1.442695
        %v464 = vpow.pop %v463
        %v465 = vmul.f32 %v459, 1.442695
        %v466 = vpow.pop %v465
        %v467 = vmul.f32 %v460, 1.442695
        %v468 = vpow.pop %v467
        %469 = vst [vmem:[%s282] sm:$0xff] %v462
        %470 = vst [vmem:[%s282 + $0x8] sm:$0xff] %v464
        %471 = vst [vmem:[%s282 + $0x10] sm:$0xff] %v466
        %472 = vst [vmem:[%s282 + $0x18] sm:$0xff] %v468
        %s473 = sld [smem:[#allocation9 + $0x1]]
        %s474 = sld [smem:[#allocation7 + $0x80]]
        %v475 = vstv %s474
        %v476 = vmul.f32 %v475, %v361
        %v477 = vmul.f32 %v475, %v362
        %v478 = vmul.f32 %v475, %v363
        %v479 = vmul.f32 %v475, %v364
        %v480 = vstv %s473
        %v481 = vadd.f32 %v480, %v476
        %v482 = vadd.f32 %v480, %v477
        %v483 = vadd.f32 %v480, %v478
        %v484 = vadd.f32 %v480, %v479
        %s485 = sld [smem:[#allocation7 + $0x81]]
        %v486 = vstv %s485
        %v487 = vmul.f32 %v486, %v391
        %v488 = vmul.f32 %v486, %v392
        %v489 = vmul.f32 %v486, %v393
        %v490 = vmul.f32 %v486, %v394
        %v491 = vadd.f32 %v481, %v487
        %v492 = vadd.f32 %v482, %v488
        %v493 = vadd.f32 %v483, %v489
        %v494 = vadd.f32 %v484, %v490
        %s495 = sld [smem:[#allocation7 + $0x82]]
        %v496 = vstv %s495
        %v497 = vmul.f32 %v496, %v421
        %v498 = vmul.f32 %v496, %v422
        %v499 = vmul.f32 %v496, %v423
        %v500 = vmul.f32 %v496, %v424
        %v501 = vadd.f32 %v491, %v497
        %v502 = vadd.f32 %v492, %v498
        %v503 = vadd.f32 %v493, %v499
        %v504 = vadd.f32 %v494, %v500
        %v505 = vmin.f32 %v501, 0.0
        %v506 = vmin.f32 %v502, 0.0
        %v507 = vmin.f32 %v503, 0.0
        %v508 = vmin.f32 %v504, 0.0
        %v509 = vmul.f32 %v505, 1.442695
        %v510 = vpow.pop %v509
        %v511 = vmul.f32 %v506, 1.442695
        %v512 = vpow.pop %v511
        %v513 = vmul.f32 %v507, 1.442695
        %v514 = vpow.pop %v513
        %v515 = vmul.f32 %v508, 1.442695
        %v516 = vpow.pop %v515
        %s517 = scalar_lea.vmem %s282, 32 [#allocation11]
        %518 = vst [vmem:[%s517] sm:$0xff] %v510
        %519 = vst [vmem:[%s517 + $0x8] sm:$0xff] %v512
        %520 = vst [vmem:[%s517 + $0x10] sm:$0xff] %v514
        %521 = vst [vmem:[%s517 + $0x18] sm:$0xff] %v516
        %s522 = sld [smem:[#allocation9 + $0x2]]
        %s523 = sld [smem:[#allocation7 + $0x100]]
        %v524 = vstv %s523
        %v525 = vmul.f32 %v524, %v361
        %v526 = vmul.f32 %v524, %v362
        %v527 = vmul.f32 %v524, %v363
        %v528 = vmul.f32 %v524, %v364
        %v529 = vstv %s522
        %v530 = vadd.f32 %v529, %v525
        %v531 = vadd.f32 %v529, %v526
        %v532 = vadd.f32 %v529, %v527
        %v533 = vadd.f32 %v529, %v528
        %s534 = sld [smem:[#allocation7 + $0x101]]
        %v535 = vstv %s534
        %v536 = vmul.f32 %v535, %v391
        %v537 = vmul.f32 %v535, %v392
        %v538 = vmul.f32 %v535, %v393
        %v539 = vmul.f32 %v535, %v394
        %v540 = vadd.f32 %v530, %v536
        %v541 = vadd.f32 %v531, %v537
        %v542 = vadd.f32 %v532, %v538
        %v543 = vadd.f32 %v533, %v539
        %s544 = sld [smem:[#allocation7 + $0x102]]
        %v545 = vstv %s544
        %v546 = vmul.f32 %v545, %v421
        %v547 = vmul.f32 %v545, %v422
        %v548 = vmul.f32 %v545, %v423
        %v549 = vmul.f32 %v545, %v424
        %v550 = vadd.f32 %v540, %v546
        %v551 = vadd.f32 %v541, %v547
        %v552 = vadd.f32 %v542, %v548
        %v553 = vadd.f32 %v543, %v549
        %v554 = vmin.f32 %v550, 0.0
        %v555 = vmin.f32 %v551, 0.0
        %v556 = vmin.f32 %v552, 0.0
        %v557 = vmin.f32 %v553, 0.0
        %v558 = vmul.f32 %v554, 1.442695
        %v559 = vpow.pop %v558
        %v560 = vmul.f32 %v555, 1.442695
        %v561 = vpow.pop %v560
        %v562 = vmul.f32 %v556, 1.442695
        %v563 = vpow.pop %v562
        %v564 = vmul.f32 %v557, 1.442695
        %v565 = vpow.pop %v564
        %s566 = scalar_lea.vmem %s282, 64 [#allocation11]
        %567 = vst [vmem:[%s566] sm:$0xff] %v559
        %568 = vst [vmem:[%s566 + $0x8] sm:$0xff] %v561
        %569 = vst [vmem:[%s566 + $0x10] sm:$0xff] %v563
        %570 = vst [vmem:[%s566 + $0x18] sm:$0xff] %v565
        %s571 = sand.u32 %s121, 1
        %s572 = scalar_lea.sflag [#allocation4], %s571
        %s573 = sand.u32 %s121, 1
        %s574 = smul.addr %s573, 96
        %s575 = scalar_lea.vmem [#allocation11], %s574
        // Predicated region
        $region53: #{tpu_custom_call.1} parent=35 // pred_check
          %p576 = pneg %p131
        $region54: #{tpu_custom_call.1} parent=35 // pred_check_branch
          %578 = sbr.rel (%p576) target = $region56
        $region55: #{tpu_custom_call.1} parent=35 // pred_region
          #allocation15 [shape = 'u32[6]{0}', space=smem, size = 0x18, scoped, tag = 'DMA stride descriptor']
          %s579 = smul.u32 4, %s24
          %581 = vsyncadd %s572, 0
          %s582 = smul.addr %s579, 8
          %s583 = scalar_lea.hbm %s4, %s582
          %s585 = sshll.u32 1, 14
          %s586 = sxor.u32 4294967295, %s585
          %s589 = sshll.u32 7, 18
          %s590 = sxor.u32 4294967295, %s589
          %s591 = sand.u32 0, %s590
          %s593 = sor.u32 %s591, 0
          %s594 = sshll.u32 %s575, 4
          %s595 = int_to_ptr.vmem [resolvable:$true] %s594
          %s596 = sshll.u32 %s583, 4
          %s597 = int_to_ptr.hbm [resolvable:$true] %s596
          %603 = sst [smem:[#allocation15]] 512
          %s604 = scalar_lea.smem [#allocation15], 1
          %605 = sst [smem:[%s604]] 1024
          %s606 = scalar_lea.smem [#allocation15], 2
          %607 = sst [smem:[%s606]] 4
          %s608 = scalar_lea.smem [#allocation15], 3
          %609 = sst [smem:[%s608]] 128
          %s610 = scalar_lea.smem [#allocation15], 4
          %611 = sst [smem:[%s610]] 128
          %s612 = scalar_lea.smem [#allocation15], 5
          %613 = sst [smem:[%s612]] 8
          %615 = dma.general %s595, 1536, %s597, %s572, [#allocation14], [#allocation15], %s593, 0
        $region56: #{tpu_custom_call.1} parent=35 // pred_fallthru
          _
      $region36: #{tpu_custom_call.1} parent=5 // pred_fallthru
        _
      %p616 = scmp.le.s32.totalorder 2, %s19
      // Predicated region
      $region57: #{tpu_custom_call.1} parent=5 // pred_check
        %p617 = pneg %p616
      $region58: #{tpu_custom_call.1} parent=5 // pred_check_branch
        %619 = sbr.rel (%p617) target = $region60
      $region59: #{tpu_custom_call.1} parent=5 // pred_region
        %s620 = ssub.s32 %s19, 2
        // Predicated region
        $region61: #{tpu_custom_call.1} parent=59 // pred_check
          %p621 = pneg %p137
        $region62: #{tpu_custom_call.1} parent=59 // pred_check_branch
          %623 = sbr.rel (%p621) target = $region64
        $region63: #{tpu_custom_call.1} parent=59 // pred_region
          %s624 = sand.u32 %s122, 1
          %s625 = scalar_lea.sflag [#allocation4], %s624
          %s626 = sand.u32 %s122, 1
          %s627 = smul.addr %s626, 96
          %s628 = scalar_lea.vmem [#allocation11], %s627
          %630 = dma.done %s625, 1536
        $region64: #{tpu_custom_call.1} parent=59 // pred_fallthru
          _
      $region60: #{tpu_custom_call.1} parent=5 // pred_fallthru
        _
    $region6: #{tpu_custom_call.1} parent=1 // loop_footer
      %s23 = sadd.s32 1, %s19
    $region7: #{tpu_custom_call.1} parent=1 // loop_footer_branch
      %18 = sbr.rel target = $region3
    $region8: #{tpu_custom_call.1} parent=1 // loop_exit
      _
    %631 = vsyncpa [#allocation3], 1
    %s632 = scalar_lea.sflag [#allocation3], 1
    %633 = vsyncpa %s632, 1
    %634 = vsyncpa [#allocation4], 1
    %s635 = scalar_lea.sflag [#allocation4], 1
    %636 = vsyncpa %s635, 1
    %637 = vsyncpa [#allocation5], 1
    %s638 = scalar_lea.sflag [#allocation5], 1
    %639 = vsyncpa %s638, 1
    %640 = vsyncpa [#allocation8], 1
    %641 = vsyncpa [#allocation6], 1
    %s642 = scalar_lea.sflag [#allocation6], 1
    %643 = vsyncpa %s642, 1

</llo_original>
